<compile_context>
chip_gen: v7x
topology: tpu7x:2x2x1
jax: 0.10.0
libtpu: 0.0.40
codegen_flags: <defaults>
</compile_context>

<pallas_src>
import math
import functools

import numpy as np
import jax
import jax.numpy as jnp
from jax.experimental import pallas as pl
from jax.experimental.pallas import tpu as pltpu


def _vmem_limit_bytes():
    # Re-derive the scoped-VMEM budget per chip generation (v5e/v6e: 128 MiB
    # physical, v7x: 64 MiB) instead of hard-coding a v6e-tuned number.
    try:
        cap = int(pltpu.get_tpu_info().vmem_capacity_bytes)
    except Exception:
        cap = 128 * 1024 * 1024
    return int(min(96 * 1024 * 1024, max(32 * 1024 * 1024, cap * 3 // 4)))


# ----------------------------------------------------------------------------
# Pallas kernel A: value projection only
#   value = src @ Wv + bv   (stored bf16 -- half the inter-kernel HBM traffic)
# ----------------------------------------------------------------------------
def _value_kernel(src_ref, wv_ref, bv_ref, value_ref):
    src_b = src_ref[0].astype(jnp.bfloat16)
    v = jnp.dot(src_b, wv_ref[...],
                preferred_element_type=jnp.float32) + bv_ref[...]
    value_ref[0] = v.astype(value_ref.dtype)


def value_proj(src_p, wv, bv, token_block):
    N, Lq_pad, D = src_p.shape
    tb = token_block
    T = Lq_pad // tb
    return pl.pallas_call(
        _value_kernel,
        out_shape=jax.ShapeDtypeStruct((N, Lq_pad, D), jnp.bfloat16),
        grid=(N, T),
        in_specs=[
            pl.BlockSpec((1, tb, D), lambda b, t: (b, t, 0)),
            pl.BlockSpec((D, D), lambda b, t: (0, 0)),
            pl.BlockSpec((1, D), lambda b, t: (0, 0)),
        ],
        out_specs=pl.BlockSpec((1, tb, D), lambda b, t: (b, t, 0)),
        compiler_params=pltpu.CompilerParams(
            dimension_semantics=("parallel", "parallel"),
            vmem_limit_bytes=_vmem_limit_bytes()),
    )(src_p, wv, bv)


# ----------------------------------------------------------------------------
# Pallas kernel B: per-token-tile
#   offsets/attention-weights projection (f32) + per-head softmax
#   + MSDeformAttn bilinear gather (one-hot matmul, spatially chunked)
#   + output_proj (folded per head) + residual + LN1
#   + FFN(relu) + residual + LN2
# (dropout1/2/3 are identity in eval mode)
# ----------------------------------------------------------------------------
def _layer_norm(x, gamma, beta, eps=1e-5):
    mu = jnp.mean(x, axis=-1, keepdims=True)
    xc = x - mu
    var = jnp.mean(xc * xc, axis=-1, keepdims=True)
    return xc * jax.lax.rsqrt(var + eps) * gamma + beta


def _attn_ffn_kernel(value_ref, src_ref, pos_ref, ref_ref,
                     wc_ref, bc_ref, wo_ref, bo_ref, g1_ref, be1_ref,
                     w1_ref, b1_ref, w2_ref, b2_ref, g2_ref, be2_ref,
                     out_ref, *, n_heads, n_levels, n_points, hd,
                     shapes, starts, hw_chunk):
    TL = src_ref.shape[1]
    M, L, P = n_heads, n_levels, n_points
    MP = M * P
    LP = L * P
    hlp = M * L * P
    off_dim = 2 * hlp

    src = src_ref[0]                       # (TL, D) f32
    q = src + pos_ref[0]                   # with_pos_embed(src, pos)

    # fused sampling_offsets + attention_weights projection, recomputed per
    # token tile (f32 so sampling coordinates track the PyTorch reference).
    comb = jnp.dot(q, wc_ref[...],
                   preferred_element_type=jnp.float32) + bc_ref[...]
    off = comb[:, :off_dim]                # columns permuted to (level, coord, head, point)
    logits = comb[:, off_dim:]             # (TL, M*L*P) canonical (head, level, point)
    lg = logits.reshape(TL, M, LP)
    lg = lg - jnp.max(lg, axis=-1, keepdims=True)
    e = jnp.exp(lg)
    aw = (e / jnp.sum(e, axis=-1, keepdims=True)).reshape(TL, M * LP)

    refs = ref_ref[0]                      # (TL, 2*L)  [x_l0, y_l0, x_l1, ...]

    head_acc = [jnp.zeros((TL, hd), jnp.float32) for _ in range(M)]

    for lvl in range(L):
        H, W = shapes[lvl]
        start = starts[lvl]
        HW = H * W
        base = 2 * lvl * MP                # x columns of this level

        # Head-major coordinate / weight tensors (M, TL, P).  Per-head columns
        # of `off`/`aw` are contiguous lane slices, so no transposes needed.
        ox = jnp.stack(
            [off[:, base + m * P: base + (m + 1) * P] for m in range(M)], axis=0)
        oy = jnp.stack(
            [off[:, base + MP + m * P: base + MP + (m + 1) * P] for m in range(M)],
            axis=0)
        awl = jnp.stack(
            [aw[:, m * LP + lvl * P: m * LP + (lvl + 1) * P] for m in range(M)],
            axis=0)

        rx = refs[:, 2 * lvl: 2 * lvl + 1].reshape(1, TL, 1)
        ry = refs[:, 2 * lvl + 1: 2 * lvl + 2].reshape(1, TL, 1)

        # pixel coords, grid_sample align_corners=False:
        #   x = (ref_x + off_x / W) * W - 0.5
        x = rx * W + ox - 0.5              # (M, TL, P)
        y = ry * H + oy - 0.5
        x0 = jnp.floor(x)
        y0 = jnp.floor(y)
        fx = x - x0
        fy = y - y0

        idx_c, w_c = [], []
        for dx, dy in ((0, 0), (1, 0), (0, 1), (1, 1)):
            xi = x0 + dx
            yi = y0 + dy
            wx = fx if dx == 1 else (1.0 - fx)
            wy = fy if dy == 1 else (1.0 - fy)
            valid = (xi >= 0) & (xi < W) & (yi >= 0) & (yi < H)
            w_c.append(wx * wy * valid.astype(jnp.float32) * awl)
            idx_c.append((jnp.clip(yi, 0, H - 1) * W
                          + jnp.clip(xi, 0, W - 1)).astype(jnp.int32))
        idx_all = jnp.concatenate(idx_c, axis=-1)       # (M, TL, 4P)
        w_all = jnp.concatenate(w_c, axis=-1)           # (M, TL, 4P)

        # Spatially tile the level so the one-hot slab stays bounded in VMEM.
        for c0 in range(0, HW, hw_chunk):
            csz = min(hw_chunk, HW - c0)
            iota = jax.lax.broadcasted_iota(jnp.int32, (1, 1, 1, csz), 3) + c0
            onehot = (idx_all[..., None] == iota).astype(jnp.float32)
            # one vectorized compare-and-sum over (4 corners x points)
            A = jnp.sum(onehot * w_all[..., None], axis=2)   # (M, TL, csz) f32
            # TODO(synk): derive the +x/+y/+xy corners from the floor-corner
            # one-hot with pltpu.roll (saves 3/4 of the compares) once the
            # chunk-boundary halo handling is in place; on v6e/v7x A could be
            # accumulated directly in bf16 (kept f32 here for v5e).
            A_b = A.astype(jnp.bfloat16)
            v_chunk = value_ref[0, start + c0: start + c0 + csz, :]  # (csz, D) bf16
            for m in range(M):
                head_acc[m] = head_acc[m] + jnp.dot(
                    A_b[m], v_chunk[:, m * hd:(m + 1) * hd],
                    preferred_element_type=jnp.float32)

    # output projection folded per head (no 8-way concatenate) + residual + LN1
    src2 = bo_ref[...]
    for m in range(M):
        src2 = src2 + jnp.dot(head_acc[m].astype(jnp.bfloat16),
                              wo_ref[m * hd:(m + 1) * hd, :],
                              preferred_element_type=jnp.float32)
    x1 = _layer_norm(src + src2, g1_ref[...], be1_ref[...])

    # FFN (relu) + residual + LN2
    h = jnp.dot(x1.astype(jnp.bfloat16), w1_ref[...],
                preferred_element_type=jnp.float32) + b1_ref[...]
    h = jnp.maximum(h, 0.0)
    x2 = jnp.dot(h.astype(jnp.bfloat16), w2_ref[...],
                 preferred_element_type=jnp.float32) + b2_ref[...]
    out_ref[0] = _layer_norm(x1 + x2, g2_ref[...], be2_ref[...])


def attn_ffn(value, src_p, pos_p, ref_p, params_k,
             n_heads, n_levels, n_points, hd, shapes, starts,
             token_block, hw_chunk):
    N, Lq_pad, D = src_p.shape
    hlp = n_heads * n_levels * n_points
    wc, bc, wo, bo, g1, be1, w1, b1, w2, b2, g2, be2 = params_k
    Dffn = w1.shape[1]
    tb = token_block
    T = Lq_pad // tb
    kernel = functools.partial(
        _attn_ffn_kernel, n_heads=n_heads, n_levels=n_levels,
        n_points=n_points, hd=hd, shapes=tuple(shapes), starts=tuple(starts),
        hw_chunk=hw_chunk)
    return pl.pallas_call(
        kernel,
        out_shape=jax.ShapeDtypeStruct((N, Lq_pad, D), jnp.float32),
        grid=(N, T),
        in_specs=[
            # Full value tensor per batch element; block index constant across
            # the token axis so it is DMA'd once per batch and stays resident.
            # TODO(synk): on v7x use pipeline_mode=pl.Buffered(1) (or pl.ANY +
            # manual per-level DMA) to avoid double-buffering this block.
            pl.BlockSpec((1, Lq_pad, D), lambda b, t: (b, 0, 0)),
            pl.BlockSpec((1, tb, D), lambda b, t: (b, t, 0)),
            pl.BlockSpec((1, tb, D), lambda b, t: (b, t, 0)),
            pl.BlockSpec((1, tb, 2 * n_levels), lambda b, t: (b, t, 0)),
            pl.BlockSpec((D, 3 * hlp), lambda b, t: (0, 0)),
            pl.BlockSpec((1, 3 * hlp), lambda b, t: (0, 0)),
            pl.BlockSpec((D, D), lambda b, t: (0, 0)),
            pl.BlockSpec((1, D), lambda b, t: (0, 0)),
            pl.BlockSpec((1, D), lambda b, t: (0, 0)),
            pl.BlockSpec((1, D), lambda b, t: (0, 0)),
            pl.BlockSpec((D, Dffn), lambda b, t: (0, 0)),
            pl.BlockSpec((1, Dffn), lambda b, t: (0, 0)),
            pl.BlockSpec((Dffn, D), lambda b, t: (0, 0)),
            pl.BlockSpec((1, D), lambda b, t: (0, 0)),
            pl.BlockSpec((1, D), lambda b, t: (0, 0)),
            pl.BlockSpec((1, D), lambda b, t: (0, 0)),
        ],
        out_specs=pl.BlockSpec((1, tb, D), lambda b, t: (b, t, 0)),
        compiler_params=pltpu.CompilerParams(
            dimension_semantics=("parallel", "parallel"),
            vmem_limit_bytes=_vmem_limit_bytes()),
    )(value, src_p, pos_p, ref_p, wc, bc, wo, bo, g1, be1,
      w1, b1, w2, b2, g2, be2)


# ----------------------------------------------------------------------------
# Host-side plumbing
# ----------------------------------------------------------------------------
def _offset_perm(n_heads, n_levels, n_points):
    """Column permutation taking canonical (m, l, p, c)-flat offset columns of
    the PyTorch sampling_offsets Linear to a (l, c, m, p)-flat layout so the
    kernel only needs contiguous static lane slices (no trailing-2 reshape)."""
    M, L, P = n_heads, n_levels, n_points
    perm = np.empty(2 * M * L * P, dtype=np.int32)
    for l in range(L):
        for c in range(2):
            for m in range(M):
                for p in range(P):
                    new = ((l * 2 + c) * M + m) * P + p
                    old = ((m * L + l) * P + p) * 2 + c
                    perm[new] = old
    return perm


def deformable_encoder_layer(p, src, pos, reference_points,
                             spatial_shapes_list, level_start_list, cfg,
                             token_block=512, hw_chunk=512):
    n_heads, n_levels, n_points = cfg
    N, Lq, D = src.shape
    hd = D // n_heads

    # fused / permuted weights.  Wc stays f32 (sampling-coordinate accuracy);
    # the heavy matmul weights are bf16.
    perm = _offset_perm(n_heads, n_levels, n_points)
    wc = jnp.concatenate([p["Woff"][:, perm], p["Waw"]], axis=1)
    bc = jnp.concatenate([p["boff"][:, perm], p["baw"]], axis=1)
    wv = p["Wv"].astype(jnp.bfloat16)
    wo = p["Wo"].astype(jnp.bfloat16)
    w1 = p["W1"].astype(jnp.bfloat16)
    w2 = p["W2"].astype(jnp.bfloat16)

    # pad the token dim to a multiple of the token tile
    tb = min(token_block, Lq)
    tb = max(8, ((tb + 7) // 8) * 8)
    Lq_pad = ((Lq + tb - 1) // tb) * tb
    pad = Lq_pad - Lq
    ref_flat = reference_points.reshape(N, Lq, 2 * n_levels)
    if pad:
        src_p = jnp.pad(src, ((0, 0), (0, pad), (0, 0)))
        pos_p = jnp.pad(pos, ((0, 0), (0, pad), (0, 0)))
        ref_p = jnp.pad(ref_flat, ((0, 0), (0, pad), (0, 0)))
    else:
        src_p, pos_p, ref_p = src, pos, ref_flat

    # kernel A: value projection (bf16) -- the only inter-kernel HBM tensor
    value = value_proj(src_p, wv, p["bv"], tb)

    # kernel B: offsets/aw recompute + deformable gather + out-proj + LN1
    #           + FFN + LN2
    params_k = (wc, bc, wo, p["bo"], p["g1"], p["be1"],
                w1, p["b1"], w2, p["b2"], p["g2"], p["be2"])
    out = attn_ffn(value, src_p, pos_p, ref_p, params_k,
                   n_heads, n_levels, n_points, hd,
                   spatial_shapes_list, level_start_list, tb, hw_chunk)
    return out[:, :Lq]


# ----------------------------------------------------------------------------
# Pure-JAX reference (f32, canonical PyTorch weight layout) for a sanity check.
# Matches F.grid_sample(mode='bilinear', padding_mode='zeros',
#                       align_corners=False).
# ----------------------------------------------------------------------------
def ms_deform_sample(value, spatial_shapes_list, level_start_list,
                     sampling_locations, attention_weights):
    N, _, M, hd = value.shape
    _, Lq, _, L, P, _ = sampling_locations.shape
    out = jnp.zeros((N, Lq, M, hd), jnp.float32)
    n_idx = jnp.arange(N)[:, None, None, None]
    m_idx = jnp.arange(M)[None, None, :, None]
    for lvl in range(L):
        H, W = spatial_shapes_list[lvl]
        start = level_start_list[lvl]
        v = value[:, start:start + H * W]
        loc = sampling_locations[:, :, :, lvl]
        x = loc[..., 0] * W - 0.5
        y = loc[..., 1] * H - 0.5
        x0 = jnp.floor(x)
        y0 = jnp.floor(y)
        fx = x - x0
        fy = y - y0
        for dx, dy in ((0, 0), (1, 0), (0, 1), (1, 1)):
            xi = x0 + dx
            yi = y0 + dy
            wx = fx if dx == 1 else (1.0 - fx)
            wy = fy if dy == 1 else (1.0 - fy)
            valid = (xi >= 0) & (xi < W) & (yi >= 0) & (yi < H)
            w = wx * wy * valid.astype(jnp.float32)
            idx = (jnp.clip(yi, 0, H - 1) * W
                   + jnp.clip(xi, 0, W - 1)).astype(jnp.int32)
            gathered = v[n_idx, idx, m_idx]
            coef = w * attention_weights[:, :, :, lvl]
            out = out + jnp.sum(gathered * coef[..., None], axis=3)
    return out.reshape(N, Lq, M * hd)


def reference_forward(p, src, pos, reference_points,
                      spatial_shapes_list, level_start_list, cfg):
    n_heads, n_levels, n_points = cfg
    N, Lq, D = src.shape
    hd = D // n_heads
    q = src + pos
    value = src @ p["Wv"] + p["bv"]
    off = q @ p["Woff"] + p["boff"]
    logits = (q @ p["Waw"] + p["baw"]).reshape(N, Lq, n_heads,
                                               n_levels * n_points)
    aw = jax.nn.softmax(logits, -1).reshape(N, Lq, n_heads, n_levels, n_points)
    value = value.reshape(N, Lq, n_heads, hd)
    off = off.reshape(N, Lq, n_heads, n_levels, n_points, 2)
    norm = jnp.array([[w, h] for (h, w) in spatial_shapes_list], jnp.float32)
    loc = (reference_points[:, :, None, :, None, :]
           + off / norm[None, None, None, :, None, :])
    attn = ms_deform_sample(value, spatial_shapes_list, level_start_list,
                            loc, aw)

    def ln(x, g, b, eps=1e-5):
        mu = jnp.mean(x, -1, keepdims=True)
        var = jnp.mean((x - mu) ** 2, -1, keepdims=True)
        return (x - mu) * jax.lax.rsqrt(var + eps) * g + b

    src2 = attn @ p["Wo"] + p["bo"]
    x = ln(src + src2, p["g1"], p["be1"])
    h = jax.nn.relu(x @ p["W1"] + p["b1"])
    x2 = h @ p["W2"] + p["b2"]
    return ln(x + x2, p["g2"], p["be2"])


# ----------------------------------------------------------------------------
# Deterministic parameter init (synthetic; shapes follow the PyTorch module)
# ----------------------------------------------------------------------------
def init_params(key, d_model, d_ffn, n_levels, n_heads, n_points):
    ks = jax.random.split(key, 8)
    hlp = n_heads * n_levels * n_points

    def lin(k, fin, fout, scale=0.05):
        return jax.random.normal(k, (fin, fout), jnp.float32) * scale

    # grid-style bias for sampling_offsets (mirrors MSDeformAttn._reset_parameters)
    thetas = jnp.arange(n_heads, dtype=jnp.float32) * (2.0 * math.pi / n_heads)
    grid = jnp.stack([jnp.cos(thetas), jnp.sin(thetas)], -1)
    grid = grid / jnp.max(jnp.abs(grid), -1, keepdims=True)
    grid = jnp.tile(grid[:, None, None, :], (1, n_levels, n_points, 1))
    grid = grid * jnp.arange(1, n_points + 1,
                             dtype=jnp.float32)[None, None, :, None]
    boff = grid.reshape(1, -1)                                  # (1, 2*hlp)

    return dict(
        Wv=lin(ks[0], d_model, d_model), bv=jnp.zeros((1, d_model), jnp.float32),
        Woff=lin(ks[1], d_model, 2 * hlp, 0.01), boff=boff,
        Waw=lin(ks[2], d_model, hlp), baw=jnp.zeros((1, hlp), jnp.float32),
        Wo=lin(ks[3], d_model, d_model), bo=jnp.zeros((1, d_model), jnp.float32),
        g1=jnp.ones((1, d_model), jnp.float32),
        be1=jnp.zeros((1, d_model), jnp.float32),
        W1=lin(ks[4], d_model, d_ffn), b1=jnp.full((1, d_ffn), 0.01, jnp.float32),
        W2=lin(ks[5], d_ffn, d_model), b2=jnp.zeros((1, d_model), jnp.float32),
        g2=jnp.ones((1, d_model), jnp.float32),
        be2=jnp.zeros((1, d_model), jnp.float32),
    )


def get_reference_points(spatial_shapes_list, batch):
    refs = []
    for (H, W) in spatial_shapes_list:
        ry, rx = jnp.meshgrid((jnp.arange(H, dtype=jnp.float32) + 0.5) / H,
                              (jnp.arange(W, dtype=jnp.float32) + 0.5) / W,
                              indexing="ij")
        refs.append(jnp.stack([rx.reshape(-1), ry.reshape(-1)], -1))
    ref = jnp.concatenate(refs, 0)
    L = len(spatial_shapes_list)
    return jnp.broadcast_to(ref[None, :, None, :], (batch, ref.shape[0], L, 2))


# ----------------------------------------------------------------------------
if __name__ == "__main__":
    d_model, d_ffn = 128, 256
    n_levels, n_heads, n_points = 2, 8, 4
    spatial_shapes_list = [(8, 8), (4, 4)]
    level_start_list = [0]
    for (h, w) in spatial_shapes_list[:-1]:
        level_start_list.append(level_start_list[-1] + h * w)
    N = 2
    Lq = sum(h * w for (h, w) in spatial_shapes_list)      # 80

    key = jax.random.PRNGKey(0)
    k_src, k_pos, k_par = jax.random.split(key, 3)
    src = jax.random.normal(k_src, (N, Lq, d_model), jnp.float32)
    pos = jax.random.normal(k_pos, (N, Lq, d_model), jnp.float32) * 0.1
    reference_points = get_reference_points(spatial_shapes_list, N)
    params = init_params(k_par, d_model, d_ffn, n_levels, n_heads, n_points)
    cfg = (n_heads, n_levels, n_points)

    out = deformable_encoder_layer(params, src, pos, reference_points,
                                   spatial_shapes_list, level_start_list, cfg)
    out = jax.block_until_ready(out)

    ref = reference_forward(params, src, pos, reference_points,
                            spatial_shapes_list, level_start_list, cfg)
    ref = jax.block_until_ready(ref)

    assert out.shape == (N, Lq, d_model)
    assert np.all(np.isfinite(np.asarray(out)))
    np.testing.assert_allclose(np.asarray(out), np.asarray(ref),
                               rtol=2e-2, atol=2e-2)
    print("KERNEL_OK")
</pallas_src>

<mosaic_0001>
module attributes {stable_mosaic.version = 11 : i64} {
  func.func @_value_kernel(%arg0: i32, %arg1: i32, %arg2: memref<1x80x128xf32, #tpu.memory_space<vmem>>, %arg3: memref<128x128xbf16, #tpu.memory_space<vmem>>, %arg4: memref<1x128xf32, #tpu.memory_space<vmem>>, %arg5: memref<1x80x128xbf16, #tpu.memory_space<vmem>>) attributes {dimension_semantics = [#tpu.dimension_semantics<parallel>, #tpu.dimension_semantics<parallel>], iteration_bounds = array<i64: 2, 1>, scalar_prefetch = 0 : i64, scratch_operands = 0 : i64, tpu.core_type = #tpu.core_type<tc>, window_params = [{transform_indices = @transform_0, window_bounds = array<i64: 1, 80, 128>}, {pipeline_mode = #tpu.pipeline_mode<synchronous>, transform_indices = @transform_1, window_bounds = array<i64: 128, 128>}, {pipeline_mode = #tpu.pipeline_mode<synchronous>, transform_indices = @transform_2, window_bounds = array<i64: 1, 128>}, {transform_indices = @transform_3, window_bounds = array<i64: 1, 80, 128>}]} {
    %c0 = arith.constant 0 : index
    %c0_0 = arith.constant 0 : index
    %c0_1 = arith.constant 0 : index
    %0 = vector.load %arg2[%c0, %c0_0, %c0_1] : memref<1x80x128xf32, #tpu.memory_space<vmem>>, vector<1x80x128xf32>
    %1 = vector.shape_cast %0 : vector<1x80x128xf32> to vector<80x128xf32>
    %2 = arith.truncf %1 : vector<80x128xf32> to vector<80x128xbf16>
    %c0_2 = arith.constant 0 : index
    %c0_3 = arith.constant 0 : index
    %3 = vector.load %arg3[%c0_2, %c0_3] : memref<128x128xbf16, #tpu.memory_space<vmem>>, vector<128x128xbf16>
    %cst = arith.constant dense<0.000000e+00> : vector<80x128xf32>
    %4 = tpu.matmul %2, %3, %cst {dimension_numbers = #tpu.dot_dimension_numbers<[1], [0], [0], [1], [0, 0, 1, 1], [], []>} : vector<80x128xbf16>, vector<128x128xbf16>, vector<80x128xf32> -> vector<80x128xf32>
    %c0_4 = arith.constant 0 : index
    %c0_5 = arith.constant 0 : index
    %5 = vector.load %arg4[%c0_4, %c0_5] : memref<1x128xf32, #tpu.memory_space<vmem>>, vector<1x128xf32>
    %6 = vector.broadcast %5 : vector<1x128xf32> to vector<80x128xf32>
    %7 = arith.addf %4, %6 : vector<80x128xf32>
    %8 = arith.truncf %7 : vector<80x128xf32> to vector<80x128xbf16>
    %c0_6 = arith.constant 0 : index
    %c0_7 = arith.constant 0 : index
    %c0_8 = arith.constant 0 : index
    %9 = vector.load %arg5[%c0_6, %c0_7, %c0_8] : memref<1x80x128xbf16, #tpu.memory_space<vmem>>, vector<1x80x128xbf16>
    %10 = vector.shape_cast %9 : vector<1x80x128xbf16> to vector<80x128xbf16>
    %11 = vector.shape_cast %8 : vector<80x128xbf16> to vector<1x80x128xbf16>
    tpu.vector_store %arg5[%c0_6, %c0_7, %c0_8], %11 {strides = array<i32>} : memref<1x80x128xbf16, #tpu.memory_space<vmem>>, vector<1x80x128xbf16>,
    return
  }
  func.func @transform_0(%arg0: i32, %arg1: i32) -> (i32, i32, i32) {
    %c0_i32 = arith.constant 0 : i32
    %c0_i32_0 = arith.constant 0 : i32
    return %arg0, %arg1, %c0_i32 : i32, i32, i32
  }
  func.func @transform_1(%arg0: i32, %arg1: i32) -> (i32, i32) {
    %c0_i32 = arith.constant 0 : i32
    %c0_i32_0 = arith.constant 0 : i32
    %c0_i32_1 = arith.constant 0 : i32
    return %c0_i32, %c0_i32_0 : i32, i32
  }
  func.func @transform_2(%arg0: i32, %arg1: i32) -> (i32, i32) {
    %c0_i32 = arith.constant 0 : i32
    %c0_i32_0 = arith.constant 0 : i32
    %c0_i32_1 = arith.constant 0 : i32
    return %c0_i32, %c0_i32_0 : i32, i32
  }
  func.func @transform_3(%arg0: i32, %arg1: i32) -> (i32, i32, i32) {
    %c0_i32 = arith.constant 0 : i32
    %c0_i32_0 = arith.constant 0 : i32
    return %arg0, %arg1, %c0_i32 : i32, i32, i32
  }
}

</mosaic_0001>

<llo_original>
// kernel: tpu_custom_call.1
$region0: #{tpu_custom_call.1}
  #allocation0 [shape = 'u32[]', space=smem, size = 0x4, offset = 0x4, fixed_abs, tag = 'smem constant byte address 0x4 - core index']
  #allocation1 [shape = 'u32[144,128]{1,0:T(1,128)}', space=vmem, size = 0x12000, scoped, tag = 'internal scratch']
  %s0 = inlined_call_operand.hbm [shape: f32[2,80,128], index: 0, kind: input, shape index: {}]
  %s1 = inlined_call_operand.hbm [shape: bf16[128,128], index: 1, kind: input, shape index: {}]
  %s2 = inlined_call_operand.hbm [shape: f32[1,128], index: 2, kind: input, shape index: {}]
  %s3 = inlined_call_operand.hbm [shape: bf16[2,80,128], index: 3, kind: output, shape index: {}]
  %s4 = sld [smem:[#allocation0]]
  $region57: #{tpu_custom_call.1} parent=0
    _
  %s6 = ssub.s32 1, %s4
  %s7 = scalar_select 0, %s6, %s4
  $region1: #{tpu_custom_call.1} parent=0
    #allocation2 [shape = 'u8[81920]{0}', space=vmem, size = 0x14000, scoped, tag = 'input window, operand 0']
    #allocation3 [shape = 's32[2]{0}', space=sflag, size = 0x8, scoped, tag = 'scoped memory for tpu_custom_call.1']
    #allocation4 [shape = 's32[2]{0}', space=sflag, size = 0x8, scoped, tag = 'scoped memory for tpu_custom_call.1']
    #allocation5 [shape = 'u8[32768]{0}', space=vmem, size = 0x8000, scoped, tag = 'input window, operand 1, single buffered']
    #allocation6 [shape = 's32[1]{0}', space=sflag, size = 0x4, scoped, tag = 'scoped memory for tpu_custom_call.1']
    #allocation7 [shape = 'u8[512]{0}', space=vmem, size = 0x400, scoped, tag = 'input window, operand 2, single buffered']
    #allocation8 [shape = 'u8[40960]{0}', space=vmem, size = 0xa000, scoped, tag = 'output window, operand 0']
    %8 = vsyncpa [#allocation3], 0
    %s9 = scalar_lea.sflag [#allocation3], 1
    %10 = vsyncpa %s9, 0
    %11 = vsyncpa [#allocation6], 0
    %12 = vsyncpa [#allocation4], 0
    %s13 = scalar_lea.sflag [#allocation4], 1
    %14 = vsyncpa %s13, 0
    loop: start=0, step=1, limit=4
    $region2: #{tpu_custom_call.1} parent=1 // loop_pre_header
      _
    $region3: #{tpu_custom_call.1} parent=1 // loop_header
      %s16 = sphi 0, %s20
      %p17 = scmp.ge.s32.totalorder %s16, 4
      %s23 = sphi 0, %s35
      %s24 = sphi 0, %s31
      %s25 = sphi 0, %s23
      %s26 = sphi 0, %s24
      %s27 = sphi 0, %s25
      %s28 = sphi 0, %s26
      %s40 = sphi 0, %s42
      %s43 = sphi 0, %s40
      %s44 = sphi 0, %s43
      %s60 = sphi 0, %s44
      %s64 = sphi 0, %s64
      %s66 = sphi 0, %s64
      %s67 = sphi 0, %s66
      %s81 = sphi 0, %s67
      %s85 = sphi 0, %s85
      %s87 = sphi 0, %s85
      %s88 = sphi 0, %s87
      %s102 = sphi 0, %s88
      %s110 = sphi 0, %s112
      %s113 = sphi 0, %s110
      %s114 = sphi 0, %s113
      %s130 = sphi 0, %s114
    $region4: #{tpu_custom_call.1} parent=1 // loop_header_branch
      %19 = sbr.rel (%p17) target = $region8
    $region5: #{tpu_custom_call.1} parent=1 // loop_body
      %s21 = ssub.s32 %s16, 1
      %s22 = ssub.s32 %s16, 2
      %s29 = sadd.s32 1, %s24
      %p30 = scmp.ge.s32.totalorder %s29, 1
      %s31 = scalar_select %p30, 0, %s29
      %s32 = sadd.s32 1, %s23
      %s33 = scalar_select %p30, %s32, %s23
      %p34 = scmp.ge.s32.totalorder %s33, 2
      %s35 = scalar_select %p34, 0, %s33
      %s36 = ssub.s32 %s23, %s35
      %s37 = ssub.s32 %s24, %s31
      %s38 = sor.u32 %s36, %s37
      %p39 = scmp.eq.s32.totalorder %s38, 0
      %s41 = sadd.s32 %s40, 1
      %s42 = scalar_select %p39, %s40, %s41
      %p45 = pneg %p39
      %p46 = scmp.eq.s32.totalorder %s16, 1
      %p47 = por %p45, %p46
      %p48 = scmp.ne.s32.totalorder %s40, %s43
      %p49 = scmp.eq.s32.totalorder %s16, 0
      %p50 = por %p48, %p49
      %p51 = scmp.ne.s32.totalorder %s40, %s43
      %p52 = scmp.eq.s32.totalorder %s21, 1
      %p53 = por %p51, %p52
      %p54 = scmp.ne.s32.totalorder %s43, %s44
      %p55 = scmp.eq.s32.totalorder %s21, 0
      %p56 = por %p54, %p55
      %p57 = scmp.ne.s32.totalorder %s43, %s44
      %p58 = scmp.eq.s32.totalorder %s22, 1
      %p59 = por %p57, %p58
      %p61 = scmp.ne.s32.totalorder %s44, %s60
      %p62 = scmp.eq.s32.totalorder %s22, 0
      %p63 = por %p61, %p62
      %s65 = sadd.s32 %s64, 1
      %p68 = scmp.eq.s32.totalorder %s16, 1
      %p69 = scmp.ne.s32.totalorder %s64, %s66
      %p70 = scmp.eq.s32.totalorder %s16, 0
      %p71 = por %p69, %p70
      %p72 = scmp.ne.s32.totalorder %s64, %s66
      %p73 = scmp.eq.s32.totalorder %s21, 1
      %p74 = por %p72, %p73
      %p75 = scmp.ne.s32.totalorder %s66, %s67
      %p76 = scmp.eq.s32.totalorder %s21, 0
      %p77 = por %p75, %p76
      %p78 = scmp.ne.s32.totalorder %s66, %s67
      %p79 = scmp.eq.s32.totalorder %s22, 1
      %p80 = por %p78, %p79
      %p82 = scmp.ne.s32.totalorder %s67, %s81
      %p83 = scmp.eq.s32.totalorder %s22, 0
      %p84 = por %p82, %p83
      %s86 = sadd.s32 %s85, 1
      %p89 = scmp.eq.s32.totalorder %s16, 1
      %p90 = scmp.ne.s32.totalorder %s85, %s87
      %p91 = scmp.eq.s32.totalorder %s16, 0
      %p92 = por %p90, %p91
      %p93 = scmp.ne.s32.totalorder %s85, %s87
      %p94 = scmp.eq.s32.totalorder %s21, 1
      %p95 = por %p93, %p94
      %p96 = scmp.ne.s32.totalorder %s87, %s88
      %p97 = scmp.eq.s32.totalorder %s21, 0
      %p98 = por %p96, %p97
      %p99 = scmp.ne.s32.totalorder %s87, %s88
      %p100 = scmp.eq.s32.totalorder %s22, 1
      %p101 = por %p99, %p100
      %p103 = scmp.ne.s32.totalorder %s88, %s102
      %p104 = scmp.eq.s32.totalorder %s22, 0
      %p105 = por %p103, %p104
      %s106 = ssub.s32 %s23, %s35
      %s107 = ssub.s32 %s24, %s31
      %s108 = sor.u32 %s106, %s107
      %p109 = scmp.eq.s32.totalorder %s108, 0
      %s111 = sadd.s32 %s110, 1
      %s112 = scalar_select %p109, %s110, %s111
      %p115 = pneg %p109
      %p116 = scmp.eq.s32.totalorder %s16, 1
      %p117 = por %p115, %p116
      %p118 = scmp.ne.s32.totalorder %s110, %s113
      %p119 = scmp.eq.s32.totalorder %s16, 0
      %p120 = por %p118, %p119
      %p121 = scmp.ne.s32.totalorder %s110, %s113
      %p122 = scmp.eq.s32.totalorder %s21, 1
      %p123 = por %p121, %p122
      %p124 = scmp.ne.s32.totalorder %s113, %s114
      %p125 = scmp.eq.s32.totalorder %s21, 0
      %p126 = por %p124, %p125
      %p127 = scmp.ne.s32.totalorder %s113, %s114
      %p128 = scmp.eq.s32.totalorder %s22, 1
      %p129 = por %p127, %p128
      %p131 = scmp.ne.s32.totalorder %s114, %s130
      %p132 = scmp.eq.s32.totalorder %s22, 0
      %p133 = por %p131, %p132
      %p134 = scmp.le.s32.totalorder 1, %s16
      %p135 = scmp.lt.s32.totalorder %s16, 3
      %p136 = pnand %p134, %p135
      %p137 = pneg %p136
      // Predicated region
      $region9: #{tpu_custom_call.1} parent=5 // pred_check
        _
      $region10: #{tpu_custom_call.1} parent=5 // pred_check_branch
        %139 = sbr.rel (%p136) target = $region12
      $region11: #{tpu_custom_call.1} parent=5 // pred_region
        %s140 = ssub.s32 %s16, 1
        // Predicated region
        $region13: #{tpu_custom_call.1} parent=11 // pred_check
          %p141 = pneg %p77
        $region14: #{tpu_custom_call.1} parent=11 // pred_check_branch
          %143 = sbr.rel (%p141) target = $region16
        $region15: #{tpu_custom_call.1} parent=11 // pred_region
          %s145 = ssub.s32 1024, 1024
          %146 = vsyncadd [#allocation6], %s145
          %s147 = sshll.u32 [#allocation5], 4
          %s148 = int_to_ptr.vmem [resolvable:$true] %s147
          %153 = dma.hbm_to_vmem [thread:$0]  %s1, 1024, %s148, [#allocation6], 64, 64, 4
        $region16: #{tpu_custom_call.1} parent=11 // pred_fallthru
          _
        // Predicated region
        $region17: #{tpu_custom_call.1} parent=11 // pred_check
          %p154 = pneg %p98
        $region18: #{tpu_custom_call.1} parent=11 // pred_check_branch
          %156 = sbr.rel (%p154) target = $region20
        $region19: #{tpu_custom_call.1} parent=11 // pred_region
          %s158 = ssub.s32 16, 16
          %159 = vsyncadd [#allocation6], %s158
          %s161 = sshll.u32 [#allocation7], 4
          %s162 = int_to_ptr.vmem [resolvable:$true] %s161
          %164 = dma.hbm_to_vmem [thread:$0]  %s2, 16, %s162, [#allocation6]
        $region20: #{tpu_custom_call.1} parent=11 // pred_fallthru
          _
      $region12: #{tpu_custom_call.1} parent=5 // pred_fallthru
        _
      %p165 = scmp.lt.s32.totalorder %s16, 2
      // Predicated region
      $region21: #{tpu_custom_call.1} parent=5 // pred_check
        %p166 = pneg %p165
      $region22: #{tpu_custom_call.1} parent=5 // pred_check_branch
        %168 = sbr.rel (%p166) target = $region24
      $region23: #{tpu_custom_call.1} parent=5 // pred_region
        // Predicated region
        $region25: #{tpu_custom_call.1} parent=23 // pred_check
          %p169 = pneg %p50
        $region26: #{tpu_custom_call.1} parent=23 // pred_check_branch
          %171 = sbr.rel (%p169) target = $region28
        $region27: #{tpu_custom_call.1} parent=23 // pred_region
          %s172 = sand.u32 %s40, 1
          %s173 = scalar_lea.sflag [#allocation3], %s172
          %s174 = sand.u32 %s40, 1
          %s175 = smul.addr %s174, 80
          %s176 = scalar_lea.vmem [#allocation2], %s175
          %s177 = smul.u32 10, %s24
          %s179 = ssub.s32 1280, 1280
          %180 = vsyncadd %s173, %s179
          %s181 = smul.addr %s23, 10
          %s182 = sadd.s32 %s177, %s181
          %s183 = smul.addr %s182, 128
          %s184 = scalar_lea.hbm %s0, %s183
          %s185 = sshll.u32 %s176, 4
          %s186 = int_to_ptr.vmem [resolvable:$true] %s185
          %191 = dma.hbm_to_vmem [thread:$0]  %s184, 1280, %s186, %s173, 128, 128, 8
        $region28: #{tpu_custom_call.1} parent=23 // pred_fallthru
          _
      $region24: #{tpu_custom_call.1} parent=5 // pred_fallthru
        _
      %p192 = scmp.le.s32.totalorder 1, %s16
      %p193 = scmp.lt.s32.totalorder %s16, 3
      %p194 = pnand %p192, %p193
      %p195 = pneg %p194
      // Predicated region
      $region29: #{tpu_custom_call.1} parent=5 // pred_check
        _
      $region30: #{tpu_custom_call.1} parent=5 // pred_check_branch
        %197 = sbr.rel (%p194) target = $region32
      $region31: #{tpu_custom_call.1} parent=5 // pred_region
        %s198 = ssub.s32 %s16, 1
        %s199 = sand.u32 %s43, 1
        %s200 = scalar_lea.sflag [#allocation3], %s199
        %s201 = sand.u32 %s43, 1
        %s202 = smul.addr %s201, 80
        %s203 = scalar_lea.vmem [#allocation2], %s202
        // Predicated region
        $region33: #{tpu_custom_call.1} parent=31 // pred_check
          %p204 = pneg %p56
        $region34: #{tpu_custom_call.1} parent=31 // pred_check_branch
          %206 = sbr.rel (%p204) target = $region36
        $region35: #{tpu_custom_call.1} parent=31 // pred_region
          %207 = dma.done %s200, 1280
        $region36: #{tpu_custom_call.1} parent=31 // pred_fallthru
          _
        // Predicated region
        $region37: #{tpu_custom_call.1} parent=31 // pred_check
          %p208 = pneg %p77
        $region38: #{tpu_custom_call.1} parent=31 // pred_check_branch
          %210 = sbr.rel (%p208) target = $region40
        $region39: #{tpu_custom_call.1} parent=31 // pred_region
          %211 = dma.done [#allocation6], 1024
        $region40: #{tpu_custom_call.1} parent=31 // pred_fallthru
          _
        // Predicated region
        $region41: #{tpu_custom_call.1} parent=31 // pred_check
          %p212 = pneg %p98
        $region42: #{tpu_custom_call.1} parent=31 // pred_check_branch
          %214 = sbr.rel (%p212) target = $region44
        $region43: #{tpu_custom_call.1} parent=31 // pred_region
          %215 = dma.done [#allocation6], 16
        $region44: #{tpu_custom_call.1} parent=31 // pred_fallthru
          _
        %s216 = sand.u32 %s43, 1
        %s217 = scalar_lea.sflag [#allocation3], %s216
        %s218 = sand.u32 %s43, 1
        %s219 = smul.addr %s218, 80
        %s220 = scalar_lea.vmem [#allocation2], %s219
        %p221 = pneg %p56
        %p222 = pneg %p53
        %p223 = pneg %p77
        %p224 = pneg %p74
        %p225 = pneg %p98
        %p226 = pneg %p95
        %p227 = pneg %p126
        %p228 = pneg %p123
        %s229 = sand.u32 %s113, 1
        %s230 = scalar_lea.sflag [#allocation4], %s229
        %s231 = sand.u32 %s113, 1
        %s232 = smul.addr %s231, 40
        %s233 = scalar_lea.vmem [#allocation8], %s232
        %s234 = smul.u32 10, %s26
        %s235 = smul.u32 10, %s26
        %v237 = vld [vmem:[%s203] sm:$0xff]
        %v238 = vld [vmem:[%s203 + $0x8] sm:$0xff]
        %v239 = vld [vmem:[%s203 + $0x10] sm:$0xff]
        %v240 = vld [vmem:[%s203 + $0x18] sm:$0xff]
        %v241 = vld [vmem:[%s203 + $0x20] sm:$0xff]
        %v242 = vld [vmem:[%s203 + $0x28] sm:$0xff]
        %v243 = vld [vmem:[%s203 + $0x30] sm:$0xff]
        %v244 = vld [vmem:[%s203 + $0x38] sm:$0xff]
        %v245 = vld [vmem:[%s203 + $0x40] sm:$0xff]
        %v246 = vld [vmem:[%s203 + $0x48] sm:$0xff]
        %v247 = vpack.c.bf16 %v238, %v237
        %v248 = vpack.c.bf16 %v240, %v239
        %v249 = vpack.c.bf16 %v242, %v241
        %v250 = vpack.c.bf16 %v244, %v243
        %v251 = vpack.c.bf16 %v246, %v245
        %v252 = vld [vmem:[#allocation5] sm:$0xf]
        %v253 = vld [vmem:[#allocation5 + $0x4] sm:$0xf]
        %v254 = vld [vmem:[#allocation5 + $0x8] sm:$0xf]
        %v255 = vld [vmem:[#allocation5 + $0xc] sm:$0xf]
        %v256 = vld [vmem:[#allocation5 + $0x10] sm:$0xf]
        %v257 = vld [vmem:[#allocation5 + $0x14] sm:$0xf]
        %v258 = vld [vmem:[#allocation5 + $0x18] sm:$0xf]
        %v259 = vld [vmem:[#allocation5 + $0x1c] sm:$0xf]
        %v260 = vld [vmem:[#allocation5 + $0x20] sm:$0xf]
        %v261 = vld [vmem:[#allocation5 + $0x24] sm:$0xf]
        %v262 = vld [vmem:[#allocation5 + $0x28] sm:$0xf]
        %v263 = vld [vmem:[#allocation5 + $0x2c] sm:$0xf]
        %v264 = vld [vmem:[#allocation5 + $0x30] sm:$0xf]
        %v265 = vld [vmem:[#allocation5 + $0x34] sm:$0xf]
        %v266 = vld [vmem:[#allocation5 + $0x38] sm:$0xf]
        %v267 = vld [vmem:[#allocation5 + $0x3c] sm:$0xf]
        %v268 = vld [vmem:[#allocation7] sm:$0x1]
        %v270 = vlaneseq
        %v271 = vshrl.u32 %v270, 7
        %v272 = vsub.s32 0, %v271
        %v273 = vrot.slane %v268, %v272
        %v291 = vunpack.c.l.b16 %v252
        %v292 = vunpack.c.l.b16 %v253
        %v293 = vunpack.c.l.b16 %v254
        %v294 = vunpack.c.l.b16 %v255
        %v295 = vunpack.c.l.b16 %v256
        %v296 = vunpack.c.l.b16 %v257
        %v297 = vunpack.c.l.b16 %v258
        %v298 = vunpack.c.l.b16 %v259
        %v299 = vunpack.c.l.b16 %v260
        %v300 = vunpack.c.l.b16 %v261
        %v301 = vunpack.c.l.b16 %v262
        %v302 = vunpack.c.l.b16 %v263
        %v303 = vunpack.c.l.b16 %v264
        %v304 = vunpack.c.l.b16 %v265
        %v305 = vunpack.c.l.b16 %v266
        %v306 = vunpack.c.l.b16 %v267
        %v307 = vpack.c.b16 %v292, %v291
        %v308 = vpack.c.b16 %v294, %v293
        %v309 = vpack.c.b16 %v296, %v295
        %v310 = vpack.c.b16 %v298, %v297
        %v311 = vpack.c.b16 %v300, %v299
        %v312 = vpack.c.b16 %v302, %v301
        %v313 = vpack.c.b16 %v304, %v303
        %v314 = vpack.c.b16 %v306, %v305
        %323 = vmatprep.subr.bf16.mxu0 0
        %324 = vmatpush1.bf16.msra.mxu0 %v307
        %325 = vmatprep.subr.bf16.mxu0 0
        %326 = vmatpush1.bf16.msra.mxu0 %v308
        %327 = vmatprep.subr.bf16.mxu0 0
        %328 = vmatpush1.bf16.msra.mxu0 %v309
        %329 = vmatprep.subr.bf16.mxu0 0
        %330 = vmatpush1.bf16.msra.mxu0 %v310
        %331 = vmatprep.subr.bf16.mxu0 0
        %332 = vmatpush1.bf16.msra.mxu0 %v311
        %333 = vmatprep.subr.bf16.mxu0 0
        %334 = vmatpush1.bf16.msra.mxu0 %v312
        %335 = vmatprep.subr.bf16.mxu0 0
        %336 = vmatpush1.bf16.msra.mxu0 %v313
        %337 = vmatprep.subr.bf16.mxu0 0
        %338 = vmatpush1.bf16.msra.mxu0 %v314
        %339 = vmatprep.subr.bf16.mxu0 0
        %340 = vmatpush1.bf16.msra.mxu0 0
        %341 = vmatprep.subr.bf16.mxu0 0
        %342 = vmatpush1.bf16.msra.mxu0 0
        %343 = vmatprep.subr.bf16.mxu0 0
        %344 = vmatpush1.bf16.msra.mxu0 0
        %345 = vmatprep.subr.bf16.mxu0 0
        %346 = vmatpush1.bf16.msra.mxu0 0
        %347 = vmatprep.subr.bf16.mxu0 0
        %348 = vmatpush1.bf16.msra.mxu0 0
        %349 = vmatprep.subr.bf16.mxu0 0
        %350 = vmatpush1.bf16.msra.mxu0 0
        %351 = vmatprep.subr.bf16.mxu0 0
        %352 = vmatpush1.bf16.msra.mxu0 0
        %353 = vmatprep.subr.bf16.mxu0 0
        %354 = vmatpush1.bf16.msra.mxu0 0
        %355 = vmatprep.mubr.bf16.mxu0 0
        %356 = vmatmul.mubr.bf16.gmra.mrb[0].mxu0 %v247
        %v357 = vpop.f32.mrb[0].mxu0
        %v358 = vadd.f32 %v273, %v357
        %v359 = vpop.f32.mrb[0].mxu0
        %v360 = vpop.f32.mrb[0].mxu0
        %v361 = vadd.f32 %v273, %v360
        %v362 = vpop.f32.mrb[0].mxu0
        %363 = vmatprep.mubr.bf16.mxu0 0
        %364 = vmatmul.mubr.bf16.gmra.mrb[0].mxu0 %v248
        %v365 = vpop.f32.mrb[0].mxu0
        %v366 = vadd.f32 %v273, %v365
        %v367 = vpop.f32.mrb[0].mxu0
        %v368 = vpop.f32.mrb[0].mxu0
        %v369 = vadd.f32 %v273, %v368
        %v370 = vpop.f32.mrb[0].mxu0
        %371 = vmatprep.mubr.bf16.mxu0 0
        %372 = vmatmul.mubr.bf16.gmra.mrb[0].mxu0 %v249
        %v373 = vpop.f32.mrb[0].mxu0
        %v374 = vadd.f32 %v273, %v373
        %v375 = vpop.f32.mrb[0].mxu0
        %v376 = vpop.f32.mrb[0].mxu0
        %v377 = vadd.f32 %v273, %v376
        %v378 = vpop.f32.mrb[0].mxu0
        %379 = vmatprep.mubr.bf16.mxu0 0
        %380 = vmatmul.mubr.bf16.gmra.mrb[0].mxu0 %v250
        %v381 = vpop.f32.mrb[0].mxu0
        %v382 = vadd.f32 %v273, %v381
        %v383 = vpop.f32.mrb[0].mxu0
        %v384 = vpop.f32.mrb[0].mxu0
        %v385 = vadd.f32 %v273, %v384
        %v386 = vpop.f32.mrb[0].mxu0
        %387 = vmatprep.mubr.bf16.mxu0 0
        %388 = vmatmul.mubr.bf16.gmra.mrb[0].mxu0 %v251
        %v389 = vpop.f32.mrb[0].mxu0
        %v390 = vadd.f32 %v273, %v389
        %v391 = vpop.f32.mrb[0].mxu0
        %v392 = vpop.f32.mrb[0].mxu0
        %v393 = vadd.f32 %v273, %v392
        %v394 = vpop.f32.mrb[0].mxu0
        %395 = vdwg.mxu0
        %v396 = vpack.c.bf16 %v361, %v358
        %v397 = vpack.c.bf16 %v369, %v366
        %v398 = vpack.c.bf16 %v377, %v374
        %v399 = vpack.c.bf16 %v385, %v382
        %v400 = vpack.c.bf16 %v393, %v390
        %v406 = vunpack.c.l.b16 %v396
        %v407 = vunpack.c.h.b16 %v396
        %v408 = vunpack.c.l.b16 %v397
        %v409 = vunpack.c.h.b16 %v397
        %v410 = vunpack.c.l.b16 %v398
        %v411 = vunpack.c.h.b16 %v398
        %v412 = vunpack.c.l.b16 %v399
        %v413 = vunpack.c.h.b16 %v399
        %v414 = vunpack.c.l.b16 %v400
        %v415 = vunpack.c.h.b16 %v400
        %v416 = vpack.c.b16 %v406, %v406
        %v417 = vpack.c.b16 %v407, %v407
        %v418 = vpack.c.b16 %v408, %v408
        %v419 = vpack.c.b16 %v409, %v409
        %v420 = vpack.c.b16 %v410, %v410
        %v421 = vpack.c.b16 %v411, %v411
        %v422 = vpack.c.b16 %v412, %v412
        %v423 = vpack.c.b16 %v413, %v413
        %v424 = vpack.c.b16 %v414, %v414
        %v425 = vpack.c.b16 %v415, %v415
        %436 = vst [vmem:[%s233] sm:$0xf] %v416
        %437 = vst [vmem:[%s233 + $0x4] sm:$0xf] %v417
        %438 = vst [vmem:[%s233 + $0x8] sm:$0xf] %v418
        %439 = vst [vmem:[%s233 + $0xc] sm:$0xf] %v419
        %440 = vst [vmem:[%s233 + $0x10] sm:$0xf] %v420
        %441 = vst [vmem:[%s233 + $0x14] sm:$0xf] %v421
        %442 = vst [vmem:[%s233 + $0x18] sm:$0xf] %v422
        %443 = vst [vmem:[%s233 + $0x1c] sm:$0xf] %v423
        %444 = vst [vmem:[%s233 + $0x20] sm:$0xf] %v424
        %445 = vst [vmem:[%s233 + $0x24] sm:$0xf] %v425
        %s446 = sand.u32 %s113, 1
        %s447 = scalar_lea.sflag [#allocation4], %s446
        %s448 = sand.u32 %s113, 1
        %s449 = smul.addr %s448, 40
        %s450 = scalar_lea.vmem [#allocation8], %s449
        // Predicated region
        $region45: #{tpu_custom_call.1} parent=31 // pred_check
          %p451 = pneg %p123
        $region46: #{tpu_custom_call.1} parent=31 // pred_check_branch
          %453 = sbr.rel (%p451) target = $region48
        $region47: #{tpu_custom_call.1} parent=31 // pred_region
          %s454 = smul.u32 10, %s26
          %s456 = ssub.s32 640, 640
          %457 = vsyncadd %s447, %s456
          %s458 = smul.addr %s25, 10
          %s459 = sadd.s32 %s454, %s458
          %s460 = smul.addr %s459, 64
          %s461 = scalar_lea.hbm %s3, %s460
          %s462 = sshll.u32 %s450, 4
          %s463 = int_to_ptr.vmem [resolvable:$true] %s462
          %468 = dma.vmem_to_hbm [thread:$0]  %s463, 640, %s461, %s447, 64, 64, 4
        $region48: #{tpu_custom_call.1} parent=31 // pred_fallthru
          _
      $region32: #{tpu_custom_call.1} parent=5 // pred_fallthru
        _
      %p469 = scmp.le.s32.totalorder 2, %s16
      // Predicated region
      $region49: #{tpu_custom_call.1} parent=5 // pred_check
        %p470 = pneg %p469
      $region50: #{tpu_custom_call.1} parent=5 // pred_check_branch
        %472 = sbr.rel (%p470) target = $region52
      $region51: #{tpu_custom_call.1} parent=5 // pred_region
        %s473 = ssub.s32 %s16, 2
        // Predicated region
        $region53: #{tpu_custom_call.1} parent=51 // pred_check
          %p474 = pneg %p129
        $region54: #{tpu_custom_call.1} parent=51 // pred_check_branch
          %476 = sbr.rel (%p474) target = $region56
        $region55: #{tpu_custom_call.1} parent=51 // pred_region
          %s477 = sand.u32 %s114, 1
          %s478 = scalar_lea.sflag [#allocation4], %s477
          %s479 = sand.u32 %s114, 1
          %s480 = smul.addr %s479, 40
          %s481 = scalar_lea.vmem [#allocation8], %s480
          %482 = dma.done %s478, 640
        $region56: #{tpu_custom_call.1} parent=51 // pred_fallthru
          _
      $region52: #{tpu_custom_call.1} parent=5 // pred_fallthru
        _
    $region6: #{tpu_custom_call.1} parent=1 // loop_footer
      %s20 = sadd.s32 1, %s16
    $region7: #{tpu_custom_call.1} parent=1 // loop_footer_branch
      %15 = sbr.rel target = $region3
    $region8: #{tpu_custom_call.1} parent=1 // loop_exit
      _
    %483 = vsyncpa [#allocation3], 1
    %s484 = scalar_lea.sflag [#allocation3], 1
    %485 = vsyncpa %s484, 1
    %486 = vsyncpa [#allocation6], 1
    %487 = vsyncpa [#allocation4], 1
    %s488 = scalar_lea.sflag [#allocation4], 1
    %489 = vsyncpa %s488, 1

</llo_original>
